<compile_context>
chip_gen: v7x
topology: tpu7x:2x2x1
jax: 0.10.0
libtpu: 0.0.40
codegen_flags: <defaults>
</compile_context>

<pallas_src>
import jax
import jax.numpy as jnp
from jax import lax
from jax.experimental import pallas as pl
from jax.experimental.pallas import tpu as pltpu

LANE = 128  # calls per grid step (lane axis width)


def pack_params(w1, b1, gamma, beta, w2, b2):
    """Pack every tiny parameter into a single f32 SMEM scalar array.

    Layout (H = hidden, In = in_features):
      [0, In*H)            w1 row-major (In, H): index i*H + j
      [In*H, In*H+H)       b1
      [In*H+H, In*H+2H)    gamma
      [In*H+2H, In*H+3H)   beta
      [In*H+3H, In*H+4H)   w2
      [In*H+4H]            b2
    Precompute this ONCE per set of weights (not per inference step).
    """
    return jnp.concatenate([
        w1.reshape(-1),
        b1.reshape(-1),
        gamma.reshape(-1),
        beta.reshape(-1),
        w2.reshape(-1),
        b2.reshape(-1),
    ]).astype(jnp.float32)


def _make_kernel(in_features: int, hidden: int, batch: int,
                 neg_slope: float = 0.01, eps: float = 1e-5):
    """Build a kernel specialized to static (in_features, hidden, batch)."""
    inv_b = 1.0 / float(batch)
    o_b1 = in_features * hidden
    o_g = o_b1 + hidden
    o_be = o_g + hidden
    o_w2 = o_be + hidden
    o_b2 = o_w2 + hidden

    def kernel(params_ref, x_ref, o_ref):
        # x_ref: (In, B, LANE)  -- independent calls on lanes, BN batch on sublanes.
        # o_ref: (B, LANE)      -- full unmasked (8,128) store.

        def hidden_body(j, z):
            # ---- fc1 row j (+ bias): VPU scalar-vector FMAs, no MXU at this size.
            # Each params_ref[...] scalar is distinct per (i, j), so there is no
            # loop-invariant broadcast to hoist here; per-j scale/shift below are
            # computed exactly once per j.
            h = x_ref[0] * params_ref[j] + params_ref[o_b1 + j]
            for i in range(1, in_features):
                h = h + x_ref[i] * params_ref[i * hidden + j]

            # ---- BatchNorm1d (training mode): fused one-pass batch stats.
            # Stack h and h*h side-by-side on the lane axis and do ONE sublane
            # reduction, then split sum and sum-of-squares.
            stacked = jnp.concatenate([h, h * h], axis=1)          # (B, 2*LANE)
            sums = jnp.sum(stacked, axis=0, keepdims=True)          # (1, 2*LANE)
            mean = sums[:, :LANE] * inv_b                           # (1, LANE)
            ex2 = sums[:, LANE:] * inv_b                            # (1, LANE)
            var = jnp.maximum(ex2 - mean * mean, 0.0)               # clamp >= 0
            scale = lax.rsqrt(var + eps) * params_ref[o_g + j]
            shift = params_ref[o_be + j] - mean * scale
            hn = h * scale + shift                                  # (B, LANE)

            # ---- LeakyReLU(negative_slope=0.01)
            a = jnp.where(hn >= 0, hn, neg_slope * hn)

            # ---- fc2 contribution (output width 1): scalar-vector FMA.
            return z + a * params_ref[o_w2 + j]

        z0 = jnp.zeros((batch, LANE), dtype=jnp.float32)
        # fori_loop keeps vreg live ranges bounded if hidden grows; unroll=True
        # gives the LLO scheduler full visibility at small static trip counts.
        z = lax.fori_loop(0, hidden, hidden_body, z0, unroll=True)
        z = z + params_ref[o_b2]

        # ---- Sigmoid on the EUP: sigmoid(z) = 0.5*tanh(z/2) + 0.5 (no VPU divide).
        o_ref[...] = 0.5 * jnp.tanh(0.5 * z) + 0.5

    return kernel


def minimal_nn_forward_stacked(x_stacked, packed_params, *, hidden):
    """G independent MinimalNN forwards in one pallas_call.

    x_stacked: (G, B, In) -- each of the G calls gets its own train-mode BN stats
               over its B samples.
    packed_params: output of pack_params (precomputed once).
    Returns: (G, B, 1).
    """
    g_calls, batch, in_features = x_stacked.shape
    g_pad = ((g_calls + LANE - 1) // LANE) * LANE

    # Lane-dense layout: calls on the last (lane) axis, batch on sublanes.
    xt = jnp.transpose(x_stacked, (2, 1, 0)).astype(jnp.float32)   # (In, B, G)
    if g_pad != g_calls:
        # Zero-padded lanes are harmless: var clamps to 0, rsqrt(eps) is finite,
        # and the padded outputs are sliced away below.
        xt = jnp.pad(xt, ((0, 0), (0, 0), (0, g_pad - g_calls)))

    kernel = _make_kernel(in_features, hidden, batch)

    out = pl.pallas_call(
        kernel,
        out_shape=jax.ShapeDtypeStruct((batch, g_pad), jnp.float32),
        grid=(g_pad // LANE,),
        in_specs=[
            pl.BlockSpec(memory_space=pltpu.SMEM),                       # packed params
            pl.BlockSpec((in_features, batch, LANE), lambda g: (0, 0, g)),
        ],
        out_specs=pl.BlockSpec((batch, LANE), lambda g: (0, g)),
        compiler_params=pltpu.CompilerParams(
            # Independent call-tiles: let v7x's two TensorCores split the grid.
            dimension_semantics=("parallel",),
        ),
    )(packed_params, xt)

    # Wrapper-side layout plumbing back to the PyTorch (G, B, 1) convention.
    return jnp.transpose(out[:, :g_calls], (1, 0)).reshape(g_calls, batch, 1)


def minimal_nn_forward(x, w1, b1, gamma, beta, w2, b2):
    """Single module forward (MinimalNN.forward semantics): x (B, In) -> (B, 1).

    Convenience path; for per-step serving loops prefer precomputing
    pack_params(...) once and stacking calls via minimal_nn_forward_stacked.
    """
    params = pack_params(w1, b1, gamma, beta, w2, b2)
    out = minimal_nn_forward_stacked(x[None], params, hidden=w1.shape[1])
    return out[0]


def reference_forward(x, w1, b1, gamma, beta, w2, b2):
    """Faithful JAX reference for the PyTorch module (training-mode BatchNorm1d)."""
    h = x @ w1 + b1
    mean = jnp.mean(h, axis=0, keepdims=True)
    var = jnp.mean((h - mean) ** 2, axis=0, keepdims=True)   # biased variance
    h = (h - mean) / jnp.sqrt(var + 1e-5) * gamma + beta
    h = jnp.where(h >= 0, h, 0.01 * h)
    z = h @ w2 + b2
    return jax.nn.sigmoid(z)


if __name__ == "__main__":
    # Module defaults: input_size=2, hidden_size=1.  Batch of 8 so BN stats are
    # meaningful; 256 stacked independent calls = 2 grid steps of 128 lanes.
    batch, input_size, hidden_size = 8, 2, 1
    n_calls = 256

    key = jax.random.PRNGKey(0)
    kx, kw1, kb1, kw2, kb2 = jax.random.split(key, 5)

    xs = jax.random.normal(kx, (n_calls, batch, input_size), dtype=jnp.float32)

    # Deterministic parameter init (PyTorch-like uniform bounds).
    bound1 = 1.0 / (input_size ** 0.5)
    w1 = jax.random.uniform(kw1, (input_size, hidden_size), jnp.float32, -bound1, bound1)
    b1 = jax.random.uniform(kb1, (1, hidden_size), jnp.float32, -bound1, bound1)
    gamma = jnp.ones((1, hidden_size), jnp.float32)   # BatchNorm1d weight init
    beta = jnp.zeros((1, hidden_size), jnp.float32)   # BatchNorm1d bias init
    bound2 = 1.0 / (hidden_size ** 0.5)
    w2 = jax.random.uniform(kw2, (hidden_size, 1), jnp.float32, -bound2, bound2)
    b2 = jax.random.uniform(kb2, (1, 1), jnp.float32, -bound2, bound2)

    # Precompute packed params once (hoisted out of any per-step serving loop).
    params = pack_params(w1, b1, gamma, beta, w2, b2)

    # --- Batched/stacked variant: 256 independent forwards in one pallas_call. ---
    out_stacked = minimal_nn_forward_stacked(xs, params, hidden=hidden_size)
    out_stacked = jax.block_until_ready(out_stacked)

    ref_stacked = jax.vmap(
        lambda xi: reference_forward(xi, w1, b1, gamma, beta, w2, b2))(xs)
    assert out_stacked.shape == (n_calls, batch, 1)
    assert jnp.allclose(out_stacked, ref_stacked, atol=1e-5, rtol=1e-5)

    # --- Single-call path (exact MinimalNN.forward semantics on one batch). ---
    out_single = minimal_nn_forward(xs[0], w1, b1, gamma, beta, w2, b2)
    out_single = jax.block_until_ready(out_single)
    assert out_single.shape == (batch, 1)
    assert jnp.allclose(out_single, ref_stacked[0], atol=1e-5, rtol=1e-5)

    print("KERNEL_OK")
</pallas_src>

<mosaic_0001>
module attributes {stable_mosaic.version = 11 : i64} {
  func.func @kernel(%arg0: i32, %arg1: memref<7xf32, #tpu.memory_space<smem>>, %arg2: memref<2x8x128xf32, #tpu.memory_space<vmem>>, %arg3: memref<8x128xf32, #tpu.memory_space<vmem>>) attributes {dimension_semantics = [#tpu.dimension_semantics<parallel>], iteration_bounds = array<i64: 2>, scalar_prefetch = 0 : i64, scratch_operands = 0 : i64, tpu.core_type = #tpu.core_type<tc>, window_params = [{transform_indices = @transform_0, window_bounds = array<i64: 7>}, {transform_indices = @transform_1, window_bounds = array<i64: 2, 8, 128>}, {transform_indices = @transform_2, window_bounds = array<i64: 8, 128>}]} {
    %cst = arith.constant 0.000000e+00 : f32
    %0 = vector.broadcast %cst : f32 to vector<8x128xf32>
    %c0_i32 = arith.constant 0 : i32
    %c0 = arith.constant 0 : index
    %c0_0 = arith.constant 0 : index
    %c0_1 = arith.constant 0 : index
    %1 = vector.load %arg2[%c0, %c0_0, %c0_1] : memref<2x8x128xf32, #tpu.memory_space<vmem>>, vector<1x8x128xf32>
    %2 = vector.shape_cast %1 : vector<1x8x128xf32> to vector<8x128xf32>
    %3 = arith.index_cast %c0_i32 : i32 to index
    %4 = memref.load %arg1[%3] : memref<7xf32, #tpu.memory_space<smem>>
    %5 = vector.broadcast %4 : f32 to vector<8x128xf32>
    %6 = arith.mulf %2, %5 : vector<8x128xf32>
    %c2_i32 = arith.constant 2 : i32
    %7 = arith.addi %c2_i32, %c0_i32 : i32
    %8 = arith.index_cast %7 : i32 to index
    %9 = memref.load %arg1[%8] : memref<7xf32, #tpu.memory_space<smem>>
    %10 = vector.broadcast %9 : f32 to vector<8x128xf32>
    %11 = arith.addf %6, %10 : vector<8x128xf32>
    %c1 = arith.constant 1 : index
    %c0_2 = arith.constant 0 : index
    %c0_3 = arith.constant 0 : index
    %12 = vector.load %arg2[%c1, %c0_2, %c0_3] : memref<2x8x128xf32, #tpu.memory_space<vmem>>, vector<1x8x128xf32>
    %13 = vector.shape_cast %12 : vector<1x8x128xf32> to vector<8x128xf32>
    %c1_i32 = arith.constant 1 : i32
    %14 = arith.addi %c1_i32, %c0_i32 : i32
    %15 = arith.index_cast %14 : i32 to index
    %16 = memref.load %arg1[%15] : memref<7xf32, #tpu.memory_space<smem>>
    %17 = vector.broadcast %16 : f32 to vector<8x128xf32>
    %18 = arith.mulf %13, %17 : vector<8x128xf32>
    %19 = arith.addf %11, %18 : vector<8x128xf32>
    %20 = arith.mulf %19, %19 : vector<8x128xf32>
    %21 = tpu.concatenate %19, %20 in 1 : vector<8x128xf32>, vector<8x128xf32> -> vector<8x256xf32>
    %cst_4 = arith.constant dense<0.000000e+00> : vector<256xf32>
    %22 = vector.multi_reduction <add>, %21, %cst_4 [0] : vector<8x256xf32> to vector<256xf32>
    %23 = vector.shape_cast %22 : vector<256xf32> to vector<1x256xf32>
    %24 = vector.extract_strided_slice %23 {offsets = [0, 0], sizes = [1, 128], strides = [1, 1]} : vector<1x256xf32> to vector<1x128xf32>
    %cst_5 = arith.constant 1.250000e-01 : f32
    %25 = vector.broadcast %cst_5 : f32 to vector<1x128xf32>
    %26 = arith.mulf %24, %25 : vector<1x128xf32>
    %27 = vector.extract_strided_slice %23 {offsets = [0, 128], sizes = [1, 128], strides = [1, 1]} : vector<1x256xf32> to vector<1x128xf32>
    %cst_6 = arith.constant 1.250000e-01 : f32
    %28 = vector.broadcast %cst_6 : f32 to vector<1x128xf32>
    %29 = arith.mulf %27, %28 : vector<1x128xf32>
    %30 = arith.mulf %26, %26 : vector<1x128xf32>
    %31 = arith.subf %29, %30 : vector<1x128xf32>
    %cst_7 = arith.constant 0.000000e+00 : f32
    %32 = vector.broadcast %cst_7 : f32 to vector<1x128xf32>
    %33 = arith.maximumf %31, %32 : vector<1x128xf32>
    %cst_8 = arith.constant 9.99999974E-6 : f32
    %34 = vector.broadcast %cst_8 : f32 to vector<1x128xf32>
    %35 = arith.addf %33, %34 : vector<1x128xf32>
    %36 = math.rsqrt %35 : vector<1x128xf32>
    %c3_i32 = arith.constant 3 : i32
    %37 = arith.addi %c3_i32, %c0_i32 : i32
    %38 = arith.index_cast %37 : i32 to index
    %39 = memref.load %arg1[%38] : memref<7xf32, #tpu.memory_space<smem>>
    %40 = vector.broadcast %39 : f32 to vector<1x128xf32>
    %41 = arith.mulf %36, %40 : vector<1x128xf32>
    %c4_i32 = arith.constant 4 : i32
    %42 = arith.addi %c4_i32, %c0_i32 : i32
    %43 = arith.index_cast %42 : i32 to index
    %44 = memref.load %arg1[%43] : memref<7xf32, #tpu.memory_space<smem>>
    %45 = arith.mulf %26, %41 : vector<1x128xf32>
    %46 = vector.broadcast %44 : f32 to vector<1x128xf32>
    %47 = arith.subf %46, %45 : vector<1x128xf32>
    %48 = vector.broadcast %41 : vector<1x128xf32> to vector<8x128xf32>
    %49 = arith.mulf %19, %48 : vector<8x128xf32>
    %50 = vector.broadcast %47 : vector<1x128xf32> to vector<8x128xf32>
    %51 = arith.addf %49, %50 : vector<8x128xf32>
    %cst_9 = arith.constant 0.000000e+00 : f32
    %52 = vector.broadcast %cst_9 : f32 to vector<8x128xf32>
    %53 = arith.cmpf oge, %51, %52 : vector<8x128xf32>
    %cst_10 = arith.constant 0.00999999977 : f32
    %54 = vector.broadcast %cst_10 : f32 to vector<8x128xf32>
    %55 = arith.mulf %54, %51 : vector<8x128xf32>
    %56 = arith.select %53, %51, %55 : vector<8x128xi1>, vector<8x128xf32>
    %c5_i32 = arith.constant 5 : i32
    %57 = arith.addi %c5_i32, %c0_i32 : i32
    %58 = arith.index_cast %57 : i32 to index
    %59 = memref.load %arg1[%58] : memref<7xf32, #tpu.memory_space<smem>>
    %60 = vector.broadcast %59 : f32 to vector<8x128xf32>
    %61 = arith.mulf %56, %60 : vector<8x128xf32>
    %62 = arith.addf %0, %61 : vector<8x128xf32>
    %c1_i32_11 = arith.constant 1 : i32
    %c6 = arith.constant 6 : index
    %63 = memref.load %arg1[%c6] : memref<7xf32, #tpu.memory_space<smem>>
    %64 = vector.broadcast %63 : f32 to vector<8x128xf32>
    %65 = arith.addf %62, %64 : vector<8x128xf32>
    %cst_12 = arith.constant 5.000000e-01 : f32
    %66 = vector.broadcast %cst_12 : f32 to vector<8x128xf32>
    %67 = arith.mulf %66, %65 : vector<8x128xf32>
    %68 = math.tanh %67 : vector<8x128xf32>
    %cst_13 = arith.constant 5.000000e-01 : f32
    %69 = vector.broadcast %cst_13 : f32 to vector<8x128xf32>
    %70 = arith.mulf %69, %68 : vector<8x128xf32>
    %cst_14 = arith.constant 5.000000e-01 : f32
    %71 = vector.broadcast %cst_14 : f32 to vector<8x128xf32>
    %72 = arith.addf %70, %71 : vector<8x128xf32>
    %c0_15 = arith.constant 0 : index
    %c0_16 = arith.constant 0 : index
    %73 = vector.load %arg3[%c0_15, %c0_16] : memref<8x128xf32, #tpu.memory_space<vmem>>, vector<8x128xf32>
    tpu.vector_store %arg3[%c0_15, %c0_16], %72 {strides = array<i32>} : memref<8x128xf32, #tpu.memory_space<vmem>>, vector<8x128xf32>,
    return
  }
  func.func @transform_0(%arg0: i32) -> i32 {
    %c0_i32 = arith.constant 0 : i32
    %c0_i32_0 = arith.constant 0 : i32
    return %c0_i32 : i32
  }
  func.func @transform_1(%arg0: i32) -> (i32, i32, i32) {
    %c0_i32 = arith.constant 0 : i32
    %c0_i32_0 = arith.constant 0 : i32
    %c0_i32_1 = arith.constant 0 : i32
    return %c0_i32, %c0_i32_0, %arg0 : i32, i32, i32
  }
  func.func @transform_2(%arg0: i32) -> (i32, i32) {
    %c0_i32 = arith.constant 0 : i32
    %c0_i32_0 = arith.constant 0 : i32
    return %c0_i32, %arg0 : i32, i32
  }
}

</mosaic_0001>

<llo_original>
// kernel: tpu_custom_call.1
$region0: #{tpu_custom_call.1}
  #allocation0 [shape = 'u32[]', space=smem, size = 0x4, offset = 0x4, fixed_abs, tag = 'smem constant byte address 0x4 - core index']
  #allocation1 [shape = 'u32[144,128]{1,0:T(1,128)}', space=vmem, size = 0x12000, scoped, tag = 'internal scratch']
  %s0 = inlined_call_operand.hbm [shape: f32[7], index: 0, kind: input, shape index: {}]
  %s1 = inlined_call_operand.hbm [shape: f32[2,8,256], index: 1, kind: input, shape index: {}]
  %s2 = inlined_call_operand.hbm [shape: f32[8,256], index: 2, kind: output, shape index: {}]
  %s3 = sld [smem:[#allocation0]]
  $region49: #{tpu_custom_call.1} parent=0
    _
  %s5 = ssub.s32 1, %s3
  %s6 = scalar_select 0, %s5, %s3
  $region1: #{tpu_custom_call.1} parent=0
    #allocation2 [shape = 'u8[512]{0}', space=smem, size = 0x200, scoped, tag = 'input window, operand 0, single buffered']
    #allocation3 [shape = 's32[2]{0}', space=sflag, size = 0x8, scoped, tag = 'scoped memory for tpu_custom_call.1']
    #allocation4 [shape = 's32[2]{0}', space=sflag, size = 0x8, scoped, tag = 'scoped memory for tpu_custom_call.1']
    #allocation5 [shape = 's32[2]{0}', space=sflag, size = 0x8, scoped, tag = 'scoped memory for tpu_custom_call.1']
    #allocation6 [shape = 'u8[16384]{0}', space=vmem, size = 0x4000, scoped, tag = 'input window, operand 1']
    #allocation7 [shape = 'u8[8192]{0}', space=vmem, size = 0x2000, scoped, tag = 'output window, operand 0']
    %7 = vsyncpa [#allocation5], 0
    %8 = vsyncpa [#allocation3], 0
    %s9 = scalar_lea.sflag [#allocation3], 1
    %10 = vsyncpa %s9, 0
    %11 = vsyncpa [#allocation4], 0
    %s12 = scalar_lea.sflag [#allocation4], 1
    %13 = vsyncpa %s12, 0
    loop: start=0, step=1, limit=4
    $region2: #{tpu_custom_call.1} parent=1 // loop_pre_header
      _
    $region3: #{tpu_custom_call.1} parent=1 // loop_header
      %s15 = sphi 0, %s19
      %p16 = scmp.ge.s32.totalorder %s15, 4
      %s23 = sphi 0, %s23
      %s25 = sphi 0, %s23
      %s26 = sphi 0, %s25
      %s40 = sphi 0, %s26
      %s46 = sphi 0, %s48
      %s49 = sphi 0, %s46
      %s50 = sphi 0, %s49
      %s66 = sphi 0, %s50
      %s72 = sphi 0, %s74
      %s75 = sphi 0, %s72
      %s76 = sphi 0, %s75
      %s92 = sphi 0, %s76
    $region4: #{tpu_custom_call.1} parent=1 // loop_header_branch
      %18 = sbr.rel (%p16) target = $region8
    $region5: #{tpu_custom_call.1} parent=1 // loop_body
      %s20 = ssub.s32 %s15, 1
      %s21 = ssub.s32 %s15, 2
      %s22 = sadd.s32 %s15, 1
      %s24 = sadd.s32 %s23, 1
      %p27 = scmp.eq.s32.totalorder %s15, 1
      %p28 = scmp.ne.s32.totalorder %s23, %s25
      %p29 = scmp.eq.s32.totalorder %s15, 0
      %p30 = por %p28, %p29
      %p31 = scmp.ne.s32.totalorder %s23, %s25
      %p32 = scmp.eq.s32.totalorder %s20, 1
      %p33 = por %p31, %p32
      %p34 = scmp.ne.s32.totalorder %s25, %s26
      %p35 = scmp.eq.s32.totalorder %s20, 0
      %p36 = por %p34, %p35
      %p37 = scmp.ne.s32.totalorder %s25, %s26
      %p38 = scmp.eq.s32.totalorder %s21, 1
      %p39 = por %p37, %p38
      %p41 = scmp.ne.s32.totalorder %s26, %s40
      %p42 = scmp.eq.s32.totalorder %s21, 0
      %p43 = por %p41, %p42
      %s44 = ssub.s32 %s15, %s22
      %p45 = scmp.eq.s32.totalorder %s44, 0
      %s47 = sadd.s32 %s46, 1
      %s48 = scalar_select %p45, %s46, %s47
      %p51 = pneg %p45
      %p52 = scmp.eq.s32.totalorder %s15, 1
      %p53 = por %p51, %p52
      %p54 = scmp.ne.s32.totalorder %s46, %s49
      %p55 = scmp.eq.s32.totalorder %s15, 0
      %p56 = por %p54, %p55
      %p57 = scmp.ne.s32.totalorder %s46, %s49
      %p58 = scmp.eq.s32.totalorder %s20, 1
      %p59 = por %p57, %p58
      %p60 = scmp.ne.s32.totalorder %s49, %s50
      %p61 = scmp.eq.s32.totalorder %s20, 0
      %p62 = por %p60, %p61
      %p63 = scmp.ne.s32.totalorder %s49, %s50
      %p64 = scmp.eq.s32.totalorder %s21, 1
      %p65 = por %p63, %p64
      %p67 = scmp.ne.s32.totalorder %s50, %s66
      %p68 = scmp.eq.s32.totalorder %s21, 0
      %p69 = por %p67, %p68
      %s70 = ssub.s32 %s15, %s22
      %p71 = scmp.eq.s32.totalorder %s70, 0
      %s73 = sadd.s32 %s72, 1
      %s74 = scalar_select %p71, %s72, %s73
      %p77 = pneg %p71
      %p78 = scmp.eq.s32.totalorder %s15, 1
      %p79 = por %p77, %p78
      %p80 = scmp.ne.s32.totalorder %s72, %s75
      %p81 = scmp.eq.s32.totalorder %s15, 0
      %p82 = por %p80, %p81
      %p83 = scmp.ne.s32.totalorder %s72, %s75
      %p84 = scmp.eq.s32.totalorder %s20, 1
      %p85 = por %p83, %p84
      %p86 = scmp.ne.s32.totalorder %s75, %s76
      %p87 = scmp.eq.s32.totalorder %s20, 0
      %p88 = por %p86, %p87
      %p89 = scmp.ne.s32.totalorder %s75, %s76
      %p90 = scmp.eq.s32.totalorder %s21, 1
      %p91 = por %p89, %p90
      %p93 = scmp.ne.s32.totalorder %s76, %s92
      %p94 = scmp.eq.s32.totalorder %s21, 0
      %p95 = por %p93, %p94
      %p96 = scmp.le.s32.totalorder 1, %s15
      %p97 = scmp.lt.s32.totalorder %s15, 3
      %p98 = pnand %p96, %p97
      %p99 = pneg %p98
      // Predicated region
      $region9: #{tpu_custom_call.1} parent=5 // pred_check
        _
      $region10: #{tpu_custom_call.1} parent=5 // pred_check_branch
        %101 = sbr.rel (%p98) target = $region12
      $region11: #{tpu_custom_call.1} parent=5 // pred_region
        %s102 = ssub.s32 %s15, 1
        // Predicated region
        $region13: #{tpu_custom_call.1} parent=11 // pred_check
          %p103 = pneg %p36
        $region14: #{tpu_custom_call.1} parent=11 // pred_check_branch
          %105 = sbr.rel (%p103) target = $region16
        $region15: #{tpu_custom_call.1} parent=11 // pred_region
          %s107 = ssub.s32 16, 16
          %108 = vsyncadd [#allocation5], %s107
          %111 = dma.hbm_to_smem %s0, 16, [#allocation2], [#allocation5]
        $region16: #{tpu_custom_call.1} parent=11 // pred_fallthru
          _
      $region12: #{tpu_custom_call.1} parent=5 // pred_fallthru
        _
      %p112 = scmp.lt.s32.totalorder %s15, 2
      // Predicated region
      $region17: #{tpu_custom_call.1} parent=5 // pred_check
        %p113 = pneg %p112
      $region18: #{tpu_custom_call.1} parent=5 // pred_check_branch
        %115 = sbr.rel (%p113) target = $region20
      $region19: #{tpu_custom_call.1} parent=5 // pred_region
        // Predicated region
        $region21: #{tpu_custom_call.1} parent=19 // pred_check
          %p116 = pneg %p56
        $region22: #{tpu_custom_call.1} parent=19 // pred_check_branch
          %118 = sbr.rel (%p116) target = $region24
        $region23: #{tpu_custom_call.1} parent=19 // pred_region
          %s119 = sand.u32 %s46, 1
          %s120 = scalar_lea.sflag [#allocation3], %s119
          %s121 = sand.u32 %s46, 1
          %s122 = smul.addr %s121, 16
          %s123 = scalar_lea.vmem [#allocation6], %s122
          %s125 = ssub.s32 256, 256
          %126 = vsyncadd %s120, %s125
          %s127 = smul.addr %s15, 128
          %s128 = scalar_lea.hbm %s1, %s127
          %s129 = sshll.u32 %s123, 4
          %s130 = int_to_ptr.vmem [resolvable:$true] %s129
          %135 = dma.hbm_to_vmem [thread:$0]  %s128, 256, %s130, %s120, 256, 128, 8
        $region24: #{tpu_custom_call.1} parent=19 // pred_fallthru
          _
      $region20: #{tpu_custom_call.1} parent=5 // pred_fallthru
        _
      %p136 = scmp.le.s32.totalorder 1, %s15
      %p137 = scmp.lt.s32.totalorder %s15, 3
      %p138 = pnand %p136, %p137
      %p139 = pneg %p138
      // Predicated region
      $region25: #{tpu_custom_call.1} parent=5 // pred_check
        _
      $region26: #{tpu_custom_call.1} parent=5 // pred_check_branch
        %141 = sbr.rel (%p138) target = $region28
      $region27: #{tpu_custom_call.1} parent=5 // pred_region
        %s142 = ssub.s32 %s15, 1
        // Predicated region
        $region29: #{tpu_custom_call.1} parent=27 // pred_check
          %p143 = pneg %p36
        $region30: #{tpu_custom_call.1} parent=27 // pred_check_branch
          %145 = sbr.rel (%p143) target = $region32
        $region31: #{tpu_custom_call.1} parent=27 // pred_region
          %146 = dma.done [#allocation5], 16
        $region32: #{tpu_custom_call.1} parent=27 // pred_fallthru
          _
        %s147 = sand.u32 %s49, 1
        %s148 = scalar_lea.sflag [#allocation3], %s147
        %s149 = sand.u32 %s49, 1
        %s150 = smul.addr %s149, 16
        %s151 = scalar_lea.vmem [#allocation6], %s150
        // Predicated region
        $region33: #{tpu_custom_call.1} parent=27 // pred_check
          %p152 = pneg %p62
        $region34: #{tpu_custom_call.1} parent=27 // pred_check_branch
          %154 = sbr.rel (%p152) target = $region36
        $region35: #{tpu_custom_call.1} parent=27 // pred_region
          %155 = dma.done %s148, 256
        $region36: #{tpu_custom_call.1} parent=27 // pred_fallthru
          _
        %156 = sfence
        %p157 = pneg %p36
        %p158 = pneg %p33
        %s159 = sand.u32 %s49, 1
        %s160 = scalar_lea.sflag [#allocation3], %s159
        %s161 = sand.u32 %s49, 1
        %s162 = smul.addr %s161, 16
        %s163 = scalar_lea.vmem [#allocation6], %s162
        %p164 = pneg %p62
        %p165 = pneg %p59
        %p166 = pneg %p88
        %p167 = pneg %p85
        %s168 = sand.u32 %s75, 1
        %s169 = scalar_lea.sflag [#allocation4], %s168
        %s170 = sand.u32 %s75, 1
        %s171 = smul.addr %s170, 8
        %s172 = scalar_lea.vmem [#allocation7], %s171
        %v173 = vld [vmem:[%s151] sm:$0xff]
        %s174 = sld [smem:[#allocation2]]
        %v175 = vstv %s174
        %v176 = vmul.f32 %v173, %v175
        %s177 = sld [smem:[#allocation2 + $0x2]]
        %v178 = vstv %s177
        %v179 = vadd.f32 %v176, %v178
        %s180 = scalar_lea.vmem %s151, 8 [#allocation6]
        %v181 = vld [vmem:[%s180] sm:$0xff]
        %s182 = sld [smem:[#allocation2 + $0x1]]
        %v183 = vstv %s182
        %v184 = vmul.f32 %v181, %v183
        %v185 = vadd.f32 %v179, %v184
        %v186 = vmul.f32 %v185, %v185
        %v187 = vrot.slane %v185, 4
        %v188 = vadd.f32 %v185, %v187
        %v189 = vrot.slane %v188, 2
        %v190 = vadd.f32 %v188, %v189
        %v191 = vrot.slane %v190, 1
        %v192 = vadd.f32 %v190, %v191
        %v193 = vrot.slane %v186, 4
        %v194 = vadd.f32 %v186, %v193
        %v195 = vrot.slane %v194, 2
        %v196 = vadd.f32 %v194, %v195
        %v197 = vrot.slane %v196, 1
        %v198 = vadd.f32 %v196, %v197
        %v199 = vmul.f32 %v192, 0.125
        %v200 = vmul.f32 %v198, 0.125
        %v201 = vmul.f32 %v199, %v199
        %v202 = vsub.f32 %v200, %v201
        %v203 = vmax.f32 %v202, 0.0
        %v204 = vadd.f32 %v203, 1e-05
        %v205 = vrsqrt.pop %v204
        %s206 = sld [smem:[#allocation2 + $0x3]]
        %v207 = vstv %s206
        %v208 = vmul.f32 %v205, %v207
        %s209 = sld [smem:[#allocation2 + $0x4]]
        %v210 = vmul.f32 %v199, %v208
        %v211 = vstv %s209
        %v212 = vsub.f32 %v211, %v210
        %v213 = vmul.f32 %v185, %v208
        %v214 = vadd.f32 %v213, %v212
        %vm215 = vcmp.ge.f32.partialorder %v214, 0.0
        %v216 = vmul.f32 %v214, 0.01
        %v217 = vsel %vm215, %v214, %v216
        %s218 = sld [smem:[#allocation2 + $0x5]]
        %v219 = vstv %s218
        %v220 = vmul.f32 %v217, %v219
        %v221 = vadd.f32 %v220, 0.0
        %s222 = sld [smem:[#allocation2 + $0x6]]
        %v223 = vstv %s222
        %v224 = vadd.f32 %v221, %v223
        %v225 = vmul.f32 %v224, 0.5
        %v226 = vtanh.pop %v225
        %v227 = vmul.f32 %v226, 0.5
        %v228 = vadd.f32 %v227, 0.5
        %229 = vst [vmem:[%s172] sm:$0xff] %v228
        %s230 = sand.u32 %s75, 1
        %s231 = scalar_lea.sflag [#allocation4], %s230
        %s232 = sand.u32 %s75, 1
        %s233 = smul.addr %s232, 8
        %s234 = scalar_lea.vmem [#allocation7], %s233
        // Predicated region
        $region37: #{tpu_custom_call.1} parent=27 // pred_check
          %p235 = pneg %p85
        $region38: #{tpu_custom_call.1} parent=27 // pred_check_branch
          %237 = sbr.rel (%p235) target = $region40
        $region39: #{tpu_custom_call.1} parent=27 // pred_region
          %s239 = ssub.s32 128, 128
          %240 = vsyncadd %s231, %s239
          %s241 = smul.addr %s20, 128
          %s242 = scalar_lea.hbm %s2, %s241
          %s244 = sshll.u32 %s234, 4
          %s245 = int_to_ptr.vmem [resolvable:$true] %s244
          %247 = dma.vmem_to_hbm [thread:$0]  %s245, 128, %s242, %s231
        $region40: #{tpu_custom_call.1} parent=27 // pred_fallthru
          _
      $region28: #{tpu_custom_call.1} parent=5 // pred_fallthru
        _
      %p248 = scmp.le.s32.totalorder 2, %s15
      // Predicated region
      $region41: #{tpu_custom_call.1} parent=5 // pred_check
        %p249 = pneg %p248
      $region42: #{tpu_custom_call.1} parent=5 // pred_check_branch
        %251 = sbr.rel (%p249) target = $region44
      $region43: #{tpu_custom_call.1} parent=5 // pred_region
        %s252 = ssub.s32 %s15, 2
        // Predicated region
        $region45: #{tpu_custom_call.1} parent=43 // pred_check
          %p253 = pneg %p91
        $region46: #{tpu_custom_call.1} parent=43 // pred_check_branch
          %255 = sbr.rel (%p253) target = $region48
        $region47: #{tpu_custom_call.1} parent=43 // pred_region
          %s256 = sand.u32 %s76, 1
          %s257 = scalar_lea.sflag [#allocation4], %s256
          %s258 = sand.u32 %s76, 1
          %s259 = smul.addr %s258, 8
          %s260 = scalar_lea.vmem [#allocation7], %s259
          %261 = dma.done %s257, 128
        $region48: #{tpu_custom_call.1} parent=43 // pred_fallthru
          _
      $region44: #{tpu_custom_call.1} parent=5 // pred_fallthru
        _
    $region6: #{tpu_custom_call.1} parent=1 // loop_footer
      %s19 = sadd.s32 1, %s15
    $region7: #{tpu_custom_call.1} parent=1 // loop_footer_branch
      %14 = sbr.rel target = $region3
    $region8: #{tpu_custom_call.1} parent=1 // loop_exit
      _
    %262 = vsyncpa [#allocation3], 1
    %s263 = scalar_lea.sflag [#allocation3], 1
    %264 = vsyncpa %s263, 1
    %265 = vsyncpa [#allocation4], 1
    %s266 = scalar_lea.sflag [#allocation4], 1
    %267 = vsyncpa %s266, 1
    %268 = vsyncpa [#allocation5], 1
    %s269 = scalar_lea.sflag [#allocation5], 1
    %270 = vsyncpa %s269, 1

</llo_original>
